<compile_context>
chip_gen: v6e
topology: v6e:2x2x1
jax: 0.10.0
libtpu: 0.0.40
codegen_flags: <defaults>
</compile_context>

<pallas_src>
import jax
import jax.numpy as jnp
from jax.experimental import pallas as pl
from jax.experimental.pallas import tpu as pltpu


def _round_up(n, m):
    return ((n + m - 1) // m) * m


def _make_critic_kernel(mm_dtype):
    def critic_kernel(x_ref, w1_ref, b1_ref, w2_ref, b2_ref, w3_ref, b3_ref, o_ref):
        # Feature-major layout; batch on lanes.
        #   x_ref : (6, TB)  mm_dtype     w1: (64, 6)  mm_dtype   b1: (64, 1) f32
        #   h1/h2 : (64, TB) f32          w2: (64, 64) mm_dtype   b2: (64, 1) f32
        #   o_ref : (1, TB)  f32          w3: (64, 1)  f32        b3: (1, 1) SMEM
        x = x_ref[...]
        h1 = jnp.dot(w1_ref[...], x, preferred_element_type=jnp.float32) + b1_ref[...]
        h1 = jnp.maximum(h1, 0.0)                                     # ReLU (f32)
        h2 = jnp.dot(w2_ref[...], h1.astype(mm_dtype),
                     preferred_element_type=jnp.float32) + b2_ref[...]
        h2 = jnp.maximum(h2, 0.0)                                     # ReLU (f32)
        # Final Linear(64 -> 1): VPU mul + sublane reduce instead of an M=1 MXU
        # stream (MXU cost scales with the TB stream length, not M).
        out = jnp.sum(h2 * w3_ref[...], axis=0, keepdims=True) + b3_ref[0, 0]
        o_ref[...] = out.astype(o_ref.dtype)

    return critic_kernel


def critic_forward(state, params, *, block_b=4096, matmul_dtype=jnp.float32):
    """state: (B, 6). Returns (B, 1) float32.

    params in PyTorch layout: W (out_features, in_features), b (out_features,).
    block_b: batch rows per grid step (rounded to a multiple of 128).
    matmul_dtype: dtype of MXU operands (f32 = exact PyTorch numerics,
                  bfloat16 = faster MXU + half the input DMA, f32 accumulation).
    """
    w1, b1, w2, b2, w3, b3 = params
    B = state.shape[0]

    # Pad the batch only to the 128-lane width; single fused pad of the transpose
    # (no zeros + dynamic-update-slice round trip through HBM).
    B_pad = _round_up(max(B, 1), 128)
    x_t = state.astype(jnp.float32).T
    if B_pad != B:
        x_t = jnp.pad(x_t, ((0, 0), (0, B_pad - B)))
    x_t = x_t.astype(matmul_dtype)

    # Tile selection: multiple of 128, no larger than the padded batch, and small
    # enough that the grid has >= 2 steps whenever B_pad allows it (pipelining +
    # v7x 2-TC sharding). The last tile may be partial.
    TB = min(_round_up(block_b, 128), B_pad)
    if B_pad >= 256:
        TB = min(TB, _round_up(pl.cdiv(B_pad, 2), 128))
    grid = (pl.cdiv(B_pad, TB),)

    w1c = w1.astype(matmul_dtype)
    w2c = w2.astype(matmul_dtype)
    b1c = b1.reshape(64, 1).astype(jnp.float32)
    b2c = b2.reshape(64, 1).astype(jnp.float32)
    w3c = w3.reshape(64, 1).astype(jnp.float32)      # (1, 64) -> column over sublanes
    b3c = b3.reshape(1, 1).astype(jnp.float32)       # scalar -> SMEM

    def const(shape):
        # Same block every grid step -> stays resident in VMEM across tiles.
        return pl.BlockSpec(shape, lambda i: (0, 0))

    itemsize = jnp.dtype(matmul_dtype).itemsize
    cost = pl.CostEstimate(
        flops=2 * B_pad * (6 * 64 + 64 * 64 + 64),
        transcendentals=0,
        bytes_accessed=(6 * B_pad * itemsize + B_pad * 4
                        + (64 * 6 + 64 * 64) * itemsize
                        + (64 + 64 + 64 + 1) * 4),
    )

    out_t = pl.pallas_call(
        _make_critic_kernel(matmul_dtype),
        out_shape=jax.ShapeDtypeStruct((1, B_pad), jnp.float32),
        grid=grid,
        in_specs=[
            pl.BlockSpec((6, TB), lambda i: (0, i)),            # activations, tiled over batch
            const((64, 6)), const((64, 1)),                     # W1, b1
            const((64, 64)), const((64, 1)),                    # W2, b2
            const((64, 1)),                                     # W3 (column)
            pl.BlockSpec(memory_space=pltpu.MemorySpace.SMEM),  # b3 scalar
        ],
        out_specs=pl.BlockSpec((1, TB), lambda i: (0, i)),
        compiler_params=pltpu.CompilerParams(
            dimension_semantics=("parallel",),                  # shard batch tiles on v7x
        ),
        cost_estimate=cost,
    )(x_t, w1c, b1c, w2c, b2c, w3c, b3c)

    return out_t[0, :B].reshape(B, 1)


def init_params(key):
    """PyTorch nn.Linear default init (U[-1/sqrt(fan_in), +1/sqrt(fan_in)]),
    stored in PyTorch layout: W (out, in), b (out,)."""
    ks = jax.random.split(key, 6)

    def linear(kw, kb, fan_in, fan_out):
        bound = 1.0 / jnp.sqrt(jnp.float32(fan_in))
        w = jax.random.uniform(kw, (fan_out, fan_in), jnp.float32, -bound, bound)
        b = jax.random.uniform(kb, (fan_out,), jnp.float32, -bound, bound)
        return w, b

    w1, b1 = linear(ks[0], ks[1], 6, 64)
    w2, b2 = linear(ks[2], ks[3], 64, 64)
    w3, b3 = linear(ks[4], ks[5], 64, 1)
    return (w1, b1, w2, b2, w3, b3)


def reference_forward(state, params):
    w1, b1, w2, b2, w3, b3 = params
    h1 = jnp.maximum(state @ w1.T + b1, 0.0)
    h2 = jnp.maximum(h1 @ w2.T + b2, 0.0)
    return h2 @ w3.T + b3


if __name__ == "__main__":
    key = jax.random.PRNGKey(0)
    k_param, k_state = jax.random.split(key)
    params = init_params(k_param)

    # batch=200: not a multiple of 128, so the 128-padded tail is exercised.
    batch = 200
    state = jax.random.normal(k_state, (batch, 6), jnp.float32)
    ref = reference_forward(state, params)

    # Multi-step grid (B_pad=256, TB=128 -> grid=(2,)), exact f32 numerics.
    out = jax.block_until_ready(critic_forward(state, params, block_b=128))
    assert out.shape == (batch, 1)
    assert jnp.allclose(out, ref, atol=1e-5, rtol=1e-5)

    # Partial last block: batch=330 -> B_pad=384, TB=256 -> grid=(2,), last
    # block only half-valid; masked tail writes + slice keep results exact.
    state2 = jax.random.normal(jax.random.PRNGKey(1), (330, 6), jnp.float32)
    ref2 = reference_forward(state2, params)
    out2 = jax.block_until_ready(critic_forward(state2, params, block_b=256))
    assert out2.shape == (330, 1)
    assert jnp.allclose(out2, ref2, atol=1e-5, rtol=1e-5)

    # Default (single-tile) path at tiny batch.
    out_small = jax.block_until_ready(critic_forward(state[:8], params))
    assert out_small.shape == (8, 1)
    assert jnp.allclose(out_small, ref[:8], atol=1e-5, rtol=1e-5)

    # Optional bf16-MXU path (numerics-policy change): validate loosely vs f32.
    out_bf16 = jax.block_until_ready(
        critic_forward(state, params, block_b=128, matmul_dtype=jnp.bfloat16))
    assert out_bf16.shape == (batch, 1)
    assert jnp.allclose(out_bf16, ref, atol=5e-2, rtol=5e-2)

    print("KERNEL_OK")
</pallas_src>

<mosaic_0001>
module attributes {stable_mosaic.version = 11 : i64} {
  func.func @critic_kernel(%arg0: i32, %arg1: memref<6x128xf32, #tpu.memory_space<vmem>>, %arg2: memref<64x6xf32, #tpu.memory_space<vmem>>, %arg3: memref<64x1xf32, #tpu.memory_space<vmem>>, %arg4: memref<64x64xf32, #tpu.memory_space<vmem>>, %arg5: memref<64x1xf32, #tpu.memory_space<vmem>>, %arg6: memref<64x1xf32, #tpu.memory_space<vmem>>, %arg7: memref<1x1xf32, #tpu.memory_space<smem>>, %arg8: memref<1x128xf32, #tpu.memory_space<vmem>>) attributes {dimension_semantics = [#tpu.dimension_semantics<parallel>], iteration_bounds = array<i64: 2>, scalar_prefetch = 0 : i64, scratch_operands = 0 : i64, tpu.core_type = #tpu.core_type<tc>, window_params = [{transform_indices = @transform_0, window_bounds = array<i64: 6, 128>}, {pipeline_mode = #tpu.pipeline_mode<synchronous>, transform_indices = @transform_1, window_bounds = array<i64: 64, 6>}, {pipeline_mode = #tpu.pipeline_mode<synchronous>, transform_indices = @transform_2, window_bounds = array<i64: 64, 1>}, {pipeline_mode = #tpu.pipeline_mode<synchronous>, transform_indices = @transform_3, window_bounds = array<i64: 64, 64>}, {pipeline_mode = #tpu.pipeline_mode<synchronous>, transform_indices = @transform_4, window_bounds = array<i64: 64, 1>}, {pipeline_mode = #tpu.pipeline_mode<synchronous>, transform_indices = @transform_5, window_bounds = array<i64: 64, 1>}, {transform_indices = @transform_6, window_bounds = array<i64: 1, 1>}, {transform_indices = @transform_7, window_bounds = array<i64: 1, 128>}]} {
    %c0 = arith.constant 0 : index
    %c0_0 = arith.constant 0 : index
    %0 = vector.load %arg1[%c0, %c0_0] : memref<6x128xf32, #tpu.memory_space<vmem>>, vector<6x128xf32>
    %c0_1 = arith.constant 0 : index
    %c0_2 = arith.constant 0 : index
    %1 = vector.load %arg2[%c0_1, %c0_2] : memref<64x6xf32, #tpu.memory_space<vmem>>, vector<64x6xf32>
    %cst = arith.constant dense<0.000000e+00> : vector<64x128xf32>
    %2 = tpu.matmul %1, %0, %cst {dimension_numbers = #tpu.dot_dimension_numbers<[1], [0], [0], [1], [0, 0, 1, 1], [], []>} : vector<64x6xf32>, vector<6x128xf32>, vector<64x128xf32> -> vector<64x128xf32>
    %c0_3 = arith.constant 0 : index
    %c0_4 = arith.constant 0 : index
    %3 = vector.load %arg3[%c0_3, %c0_4] : memref<64x1xf32, #tpu.memory_space<vmem>>, vector<64x1xf32>
    %4 = vector.broadcast %3 : vector<64x1xf32> to vector<64x128xf32>
    %5 = arith.addf %2, %4 : vector<64x128xf32>
    %cst_5 = arith.constant 0.000000e+00 : f32
    %6 = vector.broadcast %cst_5 : f32 to vector<64x128xf32>
    %7 = arith.maximumf %5, %6 : vector<64x128xf32>
    %c0_6 = arith.constant 0 : index
    %c0_7 = arith.constant 0 : index
    %8 = vector.load %arg4[%c0_6, %c0_7] : memref<64x64xf32, #tpu.memory_space<vmem>>, vector<64x64xf32>
    %cst_8 = arith.constant dense<0.000000e+00> : vector<64x128xf32>
    %9 = tpu.matmul %8, %7, %cst_8 {dimension_numbers = #tpu.dot_dimension_numbers<[1], [0], [0], [1], [0, 0, 1, 1], [], []>} : vector<64x64xf32>, vector<64x128xf32>, vector<64x128xf32> -> vector<64x128xf32>
    %c0_9 = arith.constant 0 : index
    %c0_10 = arith.constant 0 : index
    %10 = vector.load %arg5[%c0_9, %c0_10] : memref<64x1xf32, #tpu.memory_space<vmem>>, vector<64x1xf32>
    %11 = vector.broadcast %10 : vector<64x1xf32> to vector<64x128xf32>
    %12 = arith.addf %9, %11 : vector<64x128xf32>
    %cst_11 = arith.constant 0.000000e+00 : f32
    %13 = vector.broadcast %cst_11 : f32 to vector<64x128xf32>
    %14 = arith.maximumf %12, %13 : vector<64x128xf32>
    %c0_12 = arith.constant 0 : index
    %c0_13 = arith.constant 0 : index
    %15 = vector.load %arg6[%c0_12, %c0_13] : memref<64x1xf32, #tpu.memory_space<vmem>>, vector<64x1xf32>
    %16 = vector.broadcast %15 : vector<64x1xf32> to vector<64x128xf32>
    %17 = arith.mulf %14, %16 : vector<64x128xf32>
    %cst_14 = arith.constant dense<0.000000e+00> : vector<128xf32>
    %18 = vector.multi_reduction <add>, %17, %cst_14 [0] : vector<64x128xf32> to vector<128xf32>
    %19 = vector.shape_cast %18 : vector<128xf32> to vector<1x128xf32>
    %c0_15 = arith.constant 0 : index
    %c0_16 = arith.constant 0 : index
    %20 = memref.load %arg7[%c0_15, %c0_16] : memref<1x1xf32, #tpu.memory_space<smem>>
    %21 = vector.broadcast %20 : f32 to vector<1x128xf32>
    %22 = arith.addf %19, %21 : vector<1x128xf32>
    %c0_17 = arith.constant 0 : index
    %c0_18 = arith.constant 0 : index
    %23 = vector.load %arg8[%c0_17, %c0_18] : memref<1x128xf32, #tpu.memory_space<vmem>>, vector<1x128xf32>
    tpu.vector_store %arg8[%c0_17, %c0_18], %22 {strides = array<i32>} : memref<1x128xf32, #tpu.memory_space<vmem>>, vector<1x128xf32>,
    return
  }
  func.func @transform_0(%arg0: i32) -> (i32, i32) {
    %c0_i32 = arith.constant 0 : i32
    %c0_i32_0 = arith.constant 0 : i32
    return %c0_i32, %arg0 : i32, i32
  }
  func.func @transform_1(%arg0: i32) -> (i32, i32) {
    %c0_i32 = arith.constant 0 : i32
    %c0_i32_0 = arith.constant 0 : i32
    %c0_i32_1 = arith.constant 0 : i32
    return %c0_i32, %c0_i32_0 : i32, i32
  }
  func.func @transform_2(%arg0: i32) -> (i32, i32) {
    %c0_i32 = arith.constant 0 : i32
    %c0_i32_0 = arith.constant 0 : i32
    %c0_i32_1 = arith.constant 0 : i32
    return %c0_i32, %c0_i32_0 : i32, i32
  }
  func.func @transform_3(%arg0: i32) -> (i32, i32) {
    %c0_i32 = arith.constant 0 : i32
    %c0_i32_0 = arith.constant 0 : i32
    %c0_i32_1 = arith.constant 0 : i32
    return %c0_i32, %c0_i32_0 : i32, i32
  }
  func.func @transform_4(%arg0: i32) -> (i32, i32) {
    %c0_i32 = arith.constant 0 : i32
    %c0_i32_0 = arith.constant 0 : i32
    %c0_i32_1 = arith.constant 0 : i32
    return %c0_i32, %c0_i32_0 : i32, i32
  }
  func.func @transform_5(%arg0: i32) -> (i32, i32) {
    %c0_i32 = arith.constant 0 : i32
    %c0_i32_0 = arith.constant 0 : i32
    %c0_i32_1 = arith.constant 0 : i32
    return %c0_i32, %c0_i32_0 : i32, i32
  }
  func.func @transform_6(%arg0: i32) -> (i32, i32) {
    %c0_i32 = arith.constant 0 : i32
    %c0_i32_0 = arith.constant 0 : i32
    %c0_i32_1 = arith.constant 0 : i32
    return %c0_i32, %c0_i32_0 : i32, i32
  }
  func.func @transform_7(%arg0: i32) -> (i32, i32) {
    %c0_i32 = arith.constant 0 : i32
    %c0_i32_0 = arith.constant 0 : i32
    return %c0_i32, %arg0 : i32, i32
  }
}

</mosaic_0001>

<llo_original>
// kernel: tpu_custom_call.1
$region0: #{tpu_custom_call.1}
  #allocation0 [shape = 'u32[]', space=smem, size = 0x4, offset = 0x4, fixed_abs, tag = 'smem constant byte address 0x4 - core index']
  #allocation1 [shape = 'u32[144,128]{1,0:T(1,128)}', space=vmem, size = 0x12000, scoped, tag = 'internal scratch']
  #allocation2 [shape = 'f32[1,1]{1,0:T(1,128)S(6)}', space=smem, size = 0x200, scoped, tag = 'scoped memory for tpu_custom_call.1']
  %s0 = inlined_call_operand.vmem [shape: f32[6,256], index: 0, kind: input, shape index: {}]
  %s1 = inlined_call_operand.vmem [shape: f32[64,6], index: 1, kind: input, shape index: {}]
  %s2 = inlined_call_operand.vmem [shape: f32[64,1], index: 2, kind: input, shape index: {}]
  %s3 = inlined_call_operand.vmem [shape: f32[64,64], index: 3, kind: input, shape index: {}]
  %s4 = inlined_call_operand.vmem [shape: f32[64,1], index: 4, kind: input, shape index: {}]
  %s5 = inlined_call_operand.vmem [shape: f32[64,1], index: 5, kind: input, shape index: {}]
  %s6 = inlined_call_operand.<no memory space> [shape: f32[1,1], index: 6, kind: input, shape index: {}]
  %s7 = inlined_call_operand.hbm [shape: f32[1,256], index: 7, kind: output, shape index: {}]
  %s8 = sld [smem:[#allocation0]]
  $region61: #{tpu_custom_call.1} parent=0
    _
  %s10 = ssub.s32 1, %s8
  %s11 = scalar_select 0, %s10, %s8
  %12 = sst [smem:[#allocation2]] %s6
  $region1: #{tpu_custom_call.1} parent=0
    #allocation3 [shape = 'u8[1024]{0}', space=vmem, size = 0x400, scoped, tag = 'output window, operand 0']
    #allocation4 [shape = 's32[2]{0}', space=sflag, size = 0x8, scoped, tag = 'scoped memory for tpu_custom_call.1']
    %13 = vsyncpa [#allocation4], 0
    %s14 = scalar_lea.sflag [#allocation4], 1
    %15 = vsyncpa %s14, 0
    loop: start=0, step=1, limit=4
    $region2: #{tpu_custom_call.1} parent=1 // loop_pre_header
      _
    $region3: #{tpu_custom_call.1} parent=1 // loop_header
      %s17 = sphi 0, %s21
      %p18 = scmp.ge.s32.totalorder %s17, 4
      %s27 = sphi 0, %s29
      %s30 = sphi 0, %s27
      %s31 = sphi 0, %s30
      %s47 = sphi 0, %s31
      %s51 = sphi 0, %s51
      %s53 = sphi 0, %s51
      %s54 = sphi 0, %s53
      %s68 = sphi 0, %s54
      %s72 = sphi 0, %s72
      %s74 = sphi 0, %s72
      %s75 = sphi 0, %s74
      %s89 = sphi 0, %s75
      %s93 = sphi 0, %s93
      %s95 = sphi 0, %s93
      %s96 = sphi 0, %s95
      %s110 = sphi 0, %s96
      %s114 = sphi 0, %s114
      %s116 = sphi 0, %s114
      %s117 = sphi 0, %s116
      %s131 = sphi 0, %s117
      %s135 = sphi 0, %s135
      %s137 = sphi 0, %s135
      %s138 = sphi 0, %s137
      %s152 = sphi 0, %s138
      %s156 = sphi 0, %s156
      %s158 = sphi 0, %s156
      %s159 = sphi 0, %s158
      %s173 = sphi 0, %s159
      %s179 = sphi 0, %s181
      %s182 = sphi 0, %s179
      %s183 = sphi 0, %s182
      %s199 = sphi 0, %s183
    $region4: #{tpu_custom_call.1} parent=1 // loop_header_branch
      %20 = sbr.rel (%p18) target = $region8
    $region5: #{tpu_custom_call.1} parent=1 // loop_body
      %s22 = ssub.s32 %s17, 1
      %s23 = ssub.s32 %s17, 2
      %s24 = sadd.s32 %s17, 1
      %s25 = ssub.s32 %s17, %s24
      %p26 = scmp.eq.s32.totalorder %s25, 0
      %s28 = sadd.s32 %s27, 1
      %s29 = scalar_select %p26, %s27, %s28
      %p32 = pneg %p26
      %p33 = scmp.eq.s32.totalorder %s17, 1
      %p34 = por %p32, %p33
      %p35 = scmp.ne.s32.totalorder %s27, %s30
      %p36 = scmp.eq.s32.totalorder %s17, 0
      %p37 = por %p35, %p36
      %p38 = scmp.ne.s32.totalorder %s27, %s30
      %p39 = scmp.eq.s32.totalorder %s22, 1
      %p40 = por %p38, %p39
      %p41 = scmp.ne.s32.totalorder %s30, %s31
      %p42 = scmp.eq.s32.totalorder %s22, 0
      %p43 = por %p41, %p42
      %p44 = scmp.ne.s32.totalorder %s30, %s31
      %p45 = scmp.eq.s32.totalorder %s23, 1
      %p46 = por %p44, %p45
      %p48 = scmp.ne.s32.totalorder %s31, %s47
      %p49 = scmp.eq.s32.totalorder %s23, 0
      %p50 = por %p48, %p49
      %s52 = sadd.s32 %s51, 1
      %p55 = scmp.eq.s32.totalorder %s17, 1
      %p56 = scmp.ne.s32.totalorder %s51, %s53
      %p57 = scmp.eq.s32.totalorder %s17, 0
      %p58 = por %p56, %p57
      %p59 = scmp.ne.s32.totalorder %s51, %s53
      %p60 = scmp.eq.s32.totalorder %s22, 1
      %p61 = por %p59, %p60
      %p62 = scmp.ne.s32.totalorder %s53, %s54
      %p63 = scmp.eq.s32.totalorder %s22, 0
      %p64 = por %p62, %p63
      %p65 = scmp.ne.s32.totalorder %s53, %s54
      %p66 = scmp.eq.s32.totalorder %s23, 1
      %p67 = por %p65, %p66
      %p69 = scmp.ne.s32.totalorder %s54, %s68
      %p70 = scmp.eq.s32.totalorder %s23, 0
      %p71 = por %p69, %p70
      %s73 = sadd.s32 %s72, 1
      %p76 = scmp.eq.s32.totalorder %s17, 1
      %p77 = scmp.ne.s32.totalorder %s72, %s74
      %p78 = scmp.eq.s32.totalorder %s17, 0
      %p79 = por %p77, %p78
      %p80 = scmp.ne.s32.totalorder %s72, %s74
      %p81 = scmp.eq.s32.totalorder %s22, 1
      %p82 = por %p80, %p81
      %p83 = scmp.ne.s32.totalorder %s74, %s75
      %p84 = scmp.eq.s32.totalorder %s22, 0
      %p85 = por %p83, %p84
      %p86 = scmp.ne.s32.totalorder %s74, %s75
      %p87 = scmp.eq.s32.totalorder %s23, 1
      %p88 = por %p86, %p87
      %p90 = scmp.ne.s32.totalorder %s75, %s89
      %p91 = scmp.eq.s32.totalorder %s23, 0
      %p92 = por %p90, %p91
      %s94 = sadd.s32 %s93, 1
      %p97 = scmp.eq.s32.totalorder %s17, 1
      %p98 = scmp.ne.s32.totalorder %s93, %s95
      %p99 = scmp.eq.s32.totalorder %s17, 0
      %p100 = por %p98, %p99
      %p101 = scmp.ne.s32.totalorder %s93, %s95
      %p102 = scmp.eq.s32.totalorder %s22, 1
      %p103 = por %p101, %p102
      %p104 = scmp.ne.s32.totalorder %s95, %s96
      %p105 = scmp.eq.s32.totalorder %s22, 0
      %p106 = por %p104, %p105
      %p107 = scmp.ne.s32.totalorder %s95, %s96
      %p108 = scmp.eq.s32.totalorder %s23, 1
      %p109 = por %p107, %p108
      %p111 = scmp.ne.s32.totalorder %s96, %s110
      %p112 = scmp.eq.s32.totalorder %s23, 0
      %p113 = por %p111, %p112
      %s115 = sadd.s32 %s114, 1
      %p118 = scmp.eq.s32.totalorder %s17, 1
      %p119 = scmp.ne.s32.totalorder %s114, %s116
      %p120 = scmp.eq.s32.totalorder %s17, 0
      %p121 = por %p119, %p120
      %p122 = scmp.ne.s32.totalorder %s114, %s116
      %p123 = scmp.eq.s32.totalorder %s22, 1
      %p124 = por %p122, %p123
      %p125 = scmp.ne.s32.totalorder %s116, %s117
      %p126 = scmp.eq.s32.totalorder %s22, 0
      %p127 = por %p125, %p126
      %p128 = scmp.ne.s32.totalorder %s116, %s117
      %p129 = scmp.eq.s32.totalorder %s23, 1
      %p130 = por %p128, %p129
      %p132 = scmp.ne.s32.totalorder %s117, %s131
      %p133 = scmp.eq.s32.totalorder %s23, 0
      %p134 = por %p132, %p133
      %s136 = sadd.s32 %s135, 1
      %p139 = scmp.eq.s32.totalorder %s17, 1
      %p140 = scmp.ne.s32.totalorder %s135, %s137
      %p141 = scmp.eq.s32.totalorder %s17, 0
      %p142 = por %p140, %p141
      %p143 = scmp.ne.s32.totalorder %s135, %s137
      %p144 = scmp.eq.s32.totalorder %s22, 1
      %p145 = por %p143, %p144
      %p146 = scmp.ne.s32.totalorder %s137, %s138
      %p147 = scmp.eq.s32.totalorder %s22, 0
      %p148 = por %p146, %p147
      %p149 = scmp.ne.s32.totalorder %s137, %s138
      %p150 = scmp.eq.s32.totalorder %s23, 1
      %p151 = por %p149, %p150
      %p153 = scmp.ne.s32.totalorder %s138, %s152
      %p154 = scmp.eq.s32.totalorder %s23, 0
      %p155 = por %p153, %p154
      %s157 = sadd.s32 %s156, 1
      %p160 = scmp.eq.s32.totalorder %s17, 1
      %p161 = scmp.ne.s32.totalorder %s156, %s158
      %p162 = scmp.eq.s32.totalorder %s17, 0
      %p163 = por %p161, %p162
      %p164 = scmp.ne.s32.totalorder %s156, %s158
      %p165 = scmp.eq.s32.totalorder %s22, 1
      %p166 = por %p164, %p165
      %p167 = scmp.ne.s32.totalorder %s158, %s159
      %p168 = scmp.eq.s32.totalorder %s22, 0
      %p169 = por %p167, %p168
      %p170 = scmp.ne.s32.totalorder %s158, %s159
      %p171 = scmp.eq.s32.totalorder %s23, 1
      %p172 = por %p170, %p171
      %p174 = scmp.ne.s32.totalorder %s159, %s173
      %p175 = scmp.eq.s32.totalorder %s23, 0
      %p176 = por %p174, %p175
      %s177 = ssub.s32 %s17, %s24
      %p178 = scmp.eq.s32.totalorder %s177, 0
      %s180 = sadd.s32 %s179, 1
      %s181 = scalar_select %p178, %s179, %s180
      %p184 = pneg %p178
      %p185 = scmp.eq.s32.totalorder %s17, 1
      %p186 = por %p184, %p185
      %p187 = scmp.ne.s32.totalorder %s179, %s182
      %p188 = scmp.eq.s32.totalorder %s17, 0
      %p189 = por %p187, %p188
      %p190 = scmp.ne.s32.totalorder %s179, %s182
      %p191 = scmp.eq.s32.totalorder %s22, 1
      %p192 = por %p190, %p191
      %p193 = scmp.ne.s32.totalorder %s182, %s183
      %p194 = scmp.eq.s32.totalorder %s22, 0
      %p195 = por %p193, %p194
      %p196 = scmp.ne.s32.totalorder %s182, %s183
      %p197 = scmp.eq.s32.totalorder %s23, 1
      %p198 = por %p196, %p197
      %p200 = scmp.ne.s32.totalorder %s183, %s199
      %p201 = scmp.eq.s32.totalorder %s23, 0
      %p202 = por %p200, %p201
      %p203 = scmp.le.s32.totalorder 1, %s17
      %p204 = scmp.lt.s32.totalorder %s17, 3
      %p205 = pnand %p203, %p204
      %p206 = pneg %p205
      // Predicated region
      $region9: #{tpu_custom_call.1} parent=5 // pred_check
        _
      $region10: #{tpu_custom_call.1} parent=5 // pred_check_branch
        %208 = sbr.rel (%p205) target = $region12
      $region11: #{tpu_custom_call.1} parent=5 // pred_region
        %s209 = ssub.s32 %s17, 1
        // Predicated region
        $region13: #{tpu_custom_call.1} parent=11 // pred_check
          %p210 = pneg %p64
        $region14: #{tpu_custom_call.1} parent=11 // pred_check_branch
          %212 = sbr.rel (%p210) target = $region16
        $region15: #{tpu_custom_call.1} parent=11 // pred_region
          _
        $region16: #{tpu_custom_call.1} parent=11 // pred_fallthru
          _
        // Predicated region
        $region17: #{tpu_custom_call.1} parent=11 // pred_check
          %p213 = pneg %p85
        $region18: #{tpu_custom_call.1} parent=11 // pred_check_branch
          %215 = sbr.rel (%p213) target = $region20
        $region19: #{tpu_custom_call.1} parent=11 // pred_region
          _
        $region20: #{tpu_custom_call.1} parent=11 // pred_fallthru
          _
        // Predicated region
        $region21: #{tpu_custom_call.1} parent=11 // pred_check
          %p216 = pneg %p106
        $region22: #{tpu_custom_call.1} parent=11 // pred_check_branch
          %218 = sbr.rel (%p216) target = $region24
        $region23: #{tpu_custom_call.1} parent=11 // pred_region
          _
        $region24: #{tpu_custom_call.1} parent=11 // pred_fallthru
          _
        // Predicated region
        $region25: #{tpu_custom_call.1} parent=11 // pred_check
          %p219 = pneg %p127
        $region26: #{tpu_custom_call.1} parent=11 // pred_check_branch
          %221 = sbr.rel (%p219) target = $region28
        $region27: #{tpu_custom_call.1} parent=11 // pred_region
          _
        $region28: #{tpu_custom_call.1} parent=11 // pred_fallthru
          _
        // Predicated region
        $region29: #{tpu_custom_call.1} parent=11 // pred_check
          %p222 = pneg %p148
        $region30: #{tpu_custom_call.1} parent=11 // pred_check_branch
          %224 = sbr.rel (%p222) target = $region32
        $region31: #{tpu_custom_call.1} parent=11 // pred_region
          _
        $region32: #{tpu_custom_call.1} parent=11 // pred_fallthru
          _
        // Predicated region
        $region33: #{tpu_custom_call.1} parent=11 // pred_check
          %p225 = pneg %p169
        $region34: #{tpu_custom_call.1} parent=11 // pred_check_branch
          %227 = sbr.rel (%p225) target = $region36
        $region35: #{tpu_custom_call.1} parent=11 // pred_region
          _
        $region36: #{tpu_custom_call.1} parent=11 // pred_fallthru
          _
      $region12: #{tpu_custom_call.1} parent=5 // pred_fallthru
        _
      %p228 = scmp.lt.s32.totalorder %s17, 2
      // Predicated region
      $region37: #{tpu_custom_call.1} parent=5 // pred_check
        %p229 = pneg %p228
      $region38: #{tpu_custom_call.1} parent=5 // pred_check_branch
        %231 = sbr.rel (%p229) target = $region40
      $region39: #{tpu_custom_call.1} parent=5 // pred_region
        // Predicated region
        $region41: #{tpu_custom_call.1} parent=39 // pred_check
          %p232 = pneg %p37
        $region42: #{tpu_custom_call.1} parent=39 // pred_check_branch
          %234 = sbr.rel (%p232) target = $region44
        $region43: #{tpu_custom_call.1} parent=39 // pred_region
          %p235 = scmp.lt.s32.totalorder %s17, 1
          %s236 = scalar_select %p235, %s17, 1
          %s237 = smul.addr %s236, 8
          %s238 = scalar_lea.vmem %s0, %s237
        $region44: #{tpu_custom_call.1} parent=39 // pred_fallthru
          _
      $region40: #{tpu_custom_call.1} parent=5 // pred_fallthru
        _
      %p239 = scmp.le.s32.totalorder 1, %s17
      %p240 = scmp.lt.s32.totalorder %s17, 3
      %p241 = pnand %p239, %p240
      %p242 = pneg %p241
      // Predicated region
      $region45: #{tpu_custom_call.1} parent=5 // pred_check
        _
      $region46: #{tpu_custom_call.1} parent=5 // pred_check_branch
        %244 = sbr.rel (%p241) target = $region48
      $region47: #{tpu_custom_call.1} parent=5 // pred_region
        %s245 = ssub.s32 %s17, 1
        %p246 = scmp.lt.s32.totalorder %s22, 1
        %s247 = scalar_select %p246, %s22, 1
        %s248 = smul.addr %s247, 8
        %s249 = scalar_lea.vmem %s0, %s248
        %p250 = pneg %p43
        %p251 = pneg %p40
        %p252 = pneg %p64
        %p253 = pneg %p61
        %p254 = pneg %p85
        %p255 = pneg %p82
        %p256 = pneg %p106
        %p257 = pneg %p103
        %p258 = pneg %p127
        %p259 = pneg %p124
        %p260 = pneg %p148
        %p261 = pneg %p145
        %p262 = pneg %p169
        %p263 = pneg %p166
        %p264 = pneg %p195
        %p265 = pneg %p192
        %s266 = sand.u32 %s182, 1
        %s267 = scalar_lea.sflag [#allocation4], %s266
        %s268 = sand.u32 %s182, 1
        %s269 = scalar_lea.vmem [#allocation3], %s268
        %p270 = scmp.lt.s32.totalorder %s22, 1
        %s271 = scalar_select %p270, %s22, 1
        %s272 = smul.addr %s271, 8
        %s273 = scalar_lea.vmem %s0, %s272
        %v274 = vld [vmem:[%s273] sm:$0x3f]
        %v275 = vld [vmem:[%s1] sm:$0xff]
        %v276 = vld [vmem:[%s1 + $0x8] sm:$0xff]
        %v277 = vld [vmem:[%s1 + $0x10] sm:$0xff]
        %v278 = vld [vmem:[%s1 + $0x18] sm:$0xff]
        %v279 = vld [vmem:[%s1 + $0x20] sm:$0xff]
        %v280 = vld [vmem:[%s1 + $0x28] sm:$0xff]
        %v281 = vld [vmem:[%s1 + $0x30] sm:$0xff]
        %v282 = vld [vmem:[%s1 + $0x38] sm:$0xff]
        %v283 = vld [vmem:[%s2] sm:$0xff]
        %v284 = vld [vmem:[%s2 + $0x8] sm:$0xff]
        %v285 = vld [vmem:[%s2 + $0x10] sm:$0xff]
        %v286 = vld [vmem:[%s2 + $0x18] sm:$0xff]
        %v287 = vld [vmem:[%s2 + $0x20] sm:$0xff]
        %v288 = vld [vmem:[%s2 + $0x28] sm:$0xff]
        %v289 = vld [vmem:[%s2 + $0x30] sm:$0xff]
        %v290 = vld [vmem:[%s2 + $0x38] sm:$0xff]
        %292 = vset.pattern.permute.xlu0 0
        %293 = vperm.xlu0 %292, %v283
        %v294 = vpop.permute.xlu0 %293
        %297 = vset.pattern.permute.xlu0 0
        %298 = vperm.xlu0 %297, %v284
        %v299 = vpop.permute.xlu0 %298
        %302 = vset.pattern.permute.xlu0 0
        %303 = vperm.xlu0 %302, %v285
        %v304 = vpop.permute.xlu0 %303
        %307 = vset.pattern.permute.xlu0 0
        %308 = vperm.xlu0 %307, %v286
        %v309 = vpop.permute.xlu0 %308
        %312 = vset.pattern.permute.xlu0 0
        %313 = vperm.xlu0 %312, %v287
        %v314 = vpop.permute.xlu0 %313
        %317 = vset.pattern.permute.xlu0 0
        %318 = vperm.xlu0 %317, %v288
        %v319 = vpop.permute.xlu0 %318
        %322 = vset.pattern.permute.xlu0 0
        %323 = vperm.xlu0 %322, %v289
        %v324 = vpop.permute.xlu0 %323
        %327 = vset.pattern.permute.xlu0 0
        %328 = vperm.xlu0 %327, %v290
        %v329 = vpop.permute.xlu0 %328
        %vm331 = vcmask 48128
        %v333 = vsel %vm331, %v275, 0
        %v336 = vsel %vm331, %v276, 0
        %v339 = vsel %vm331, %v277, 0
        %v342 = vsel %vm331, %v278, 0
        %v345 = vsel %vm331, %v279, 0
        %v348 = vsel %vm331, %v280, 0
        %v351 = vsel %vm331, %v281, 0
        %v354 = vsel %vm331, %v282, 0
        %vm356 = vcmask 1045504
        %v358 = vsel %vm356, %v274, 0
        %360 = vmatprep.subr.mxu0 0.0
        %361 = vmatpush1.msra.mxu0 0.0
        %362 = vmatprep.subr.mxu0 0.0
        %363 = vmatpush1.msra.mxu0 0.0
        %364 = vmatprep.subr.mxu0 0.0
        %365 = vmatpush1.msra.mxu0 0.0
        %366 = vmatprep.subr.mxu0 0.0
        %367 = vmatpush1.msra.mxu0 0.0
        %368 = vmatprep.subr.mxu0 0.0
        %369 = vmatpush1.msra.mxu0 0.0
        %370 = vmatprep.subr.mxu0 0.0
        %371 = vmatpush1.msra.mxu0 0.0
        %372 = vmatprep.subr.mxu0 0.0
        %373 = vmatpush1.msra.mxu0 0.0
        %374 = vmatprep.subr.mxu0 0.0
        %375 = vmatpush1.msra.mxu0 0.0
        %376 = vmatprep.subr.mxu0 0.0
        %377 = vmatpush1.msra.mxu0 0.0
        %378 = vmatprep.subr.mxu0 0.0
        %379 = vmatpush1.msra.mxu0 0.0
        %380 = vmatprep.subr.mxu0 0.0
        %381 = vmatpush1.msra.mxu0 0.0
        %382 = vmatprep.subr.mxu0 0.0
        %383 = vmatpush1.msra.mxu0 0.0
        %384 = vmatprep.subr.mxu0 0.0
        %385 = vmatpush1.msra.mxu0 0.0
        %386 = vmatprep.subr.mxu0 0.0
        %387 = vmatpush1.msra.mxu0 0.0
        %388 = vmatprep.subr.mxu0 0.0
        %389 = vmatpush1.msra.mxu0 0.0
        %390 = vmatprep.subr.mxu0 0.0
        %391 = vmatpush1.msra.mxu0 %v358
        %392 = vmatprep.subr.mxu0 0.0
        %393 = vmatpush2.msra.mxu0 0.0
        %394 = vmatprep.subr.mxu0 0.0
        %395 = vmatpush2.msra.mxu0 0.0
        %396 = vmatprep.subr.mxu0 0.0
        %397 = vmatpush2.msra.mxu0 0.0
        %398 = vmatprep.subr.mxu0 0.0
        %399 = vmatpush2.msra.mxu0 0.0
        %400 = vmatprep.subr.mxu0 0.0
        %401 = vmatpush2.msra.mxu0 0.0
        %402 = vmatprep.subr.mxu0 0.0
        %403 = vmatpush2.msra.mxu0 0.0
        %404 = vmatprep.subr.mxu0 0.0
        %405 = vmatpush2.msra.mxu0 0.0
        %406 = vmatprep.subr.mxu0 0.0
        %407 = vmatpush2.msra.mxu0 0.0
        %408 = vmatprep.subr.mxu0 0.0
        %409 = vmatpush2.msra.mxu0 0.0
        %410 = vmatprep.subr.mxu0 0.0
        %411 = vmatpush2.msra.mxu0 0.0
        %412 = vmatprep.subr.mxu0 0.0
        %413 = vmatpush2.msra.mxu0 0.0
        %414 = vmatprep.subr.mxu0 0.0
        %415 = vmatpush2.msra.mxu0 0.0
        %416 = vmatprep.subr.mxu0 0.0
        %417 = vmatpush2.msra.mxu0 0.0
        %418 = vmatprep.subr.mxu0 0.0
        %419 = vmatpush2.msra.mxu0 0.0
        %420 = vmatprep.subr.mxu0 0.0
        %421 = vmatpush2.msra.mxu0 0.0
        %422 = vmatprep.subr.mxu0 0.0
        %423 = vmatpush2.msra.mxu0 0.0
        %424 = vmatprep.mubr.f32.mxu0 0.0
        %425 = vmatmul.mubr.f32.gmra.mxu0 %v333
        %v426 = vpop.f32.mrf.mxu0
        %v427 = vadd.f32 %v294, %v426
        %v428 = vpop.f32.mrf.mxu0
        %429 = vmatprep.mubr.f32.mxu0 0.0
        %430 = vmatmul.mubr.f32.gmra.mxu0 %v336
        %v431 = vpop.f32.mrf.mxu0
        %v432 = vadd.f32 %v299, %v431
        %v433 = vpop.f32.mrf.mxu0
        %434 = vmatprep.mubr.f32.mxu0 0.0
        %435 = vmatmul.mubr.f32.gmra.mxu0 %v339
        %v436 = vpop.f32.mrf.mxu0
        %v437 = vadd.f32 %v304, %v436
        %v438 = vpop.f32.mrf.mxu0
        %439 = vmatprep.mubr.f32.mxu0 0.0
        %440 = vmatmul.mubr.f32.gmra.mxu0 %v342
        %v441 = vpop.f32.mrf.mxu0
        %v442 = vadd.f32 %v309, %v441
        %v443 = vpop.f32.mrf.mxu0
        %444 = vmatprep.mubr.f32.mxu0 0.0
        %445 = vmatmul.mubr.f32.gmra.mxu0 %v345
        %v446 = vpop.f32.mrf.mxu0
        %v447 = vadd.f32 %v314, %v446
        %v448 = vpop.f32.mrf.mxu0
        %449 = vmatprep.mubr.f32.mxu0 0.0
        %450 = vmatmul.mubr.f32.gmra.mxu0 %v348
        %v451 = vpop.f32.mrf.mxu0
        %v452 = vadd.f32 %v319, %v451
        %v453 = vpop.f32.mrf.mxu0
        %454 = vmatprep.mubr.f32.mxu0 0.0
        %455 = vmatmul.mubr.f32.gmra.mxu0 %v351
        %v456 = vpop.f32.mrf.mxu0
        %v457 = vadd.f32 %v324, %v456
        %v458 = vpop.f32.mrf.mxu0
        %459 = vmatprep.mubr.f32.mxu0 0.0
        %460 = vmatmul.mubr.f32.gmra.mxu0 %v354
        %v461 = vpop.f32.mrf.mxu0
        %v462 = vadd.f32 %v329, %v461
        %v463 = vpop.f32.mrf.mxu0
        %464 = vdwg.mxu0
        %v465 = vmax.f32 %v427, 0.0
        %v466 = vmax.f32 %v432, 0.0
        %v467 = vmax.f32 %v437, 0.0
        %v468 = vmax.f32 %v442, 0.0
        %v469 = vmax.f32 %v447, 0.0
        %v470 = vmax.f32 %v452, 0.0
        %v471 = vmax.f32 %v457, 0.0
        %v472 = vmax.f32 %v462, 0.0
        %v473 = vld [vmem:[%s3] sm:$0xff]
        %v474 = vld [vmem:[%s3 + $0x8] sm:$0xff]
        %v475 = vld [vmem:[%s3 + $0x10] sm:$0xff]
        %v476 = vld [vmem:[%s3 + $0x18] sm:$0xff]
        %v477 = vld [vmem:[%s3 + $0x20] sm:$0xff]
        %v478 = vld [vmem:[%s3 + $0x28] sm:$0xff]
        %v479 = vld [vmem:[%s3 + $0x30] sm:$0xff]
        %v480 = vld [vmem:[%s3 + $0x38] sm:$0xff]
        %v481 = vld [vmem:[%s4] sm:$0xff]
        %v482 = vld [vmem:[%s4 + $0x8] sm:$0xff]
        %v483 = vld [vmem:[%s4 + $0x10] sm:$0xff]
        %v484 = vld [vmem:[%s4 + $0x18] sm:$0xff]
        %v485 = vld [vmem:[%s4 + $0x20] sm:$0xff]
        %v486 = vld [vmem:[%s4 + $0x28] sm:$0xff]
        %v487 = vld [vmem:[%s4 + $0x30] sm:$0xff]
        %v488 = vld [vmem:[%s4 + $0x38] sm:$0xff]
        %490 = vset.pattern.permute.xlu0 0
        %491 = vperm.xlu0 %490, %v481
        %v492 = vpop.permute.xlu0 %491
        %495 = vset.pattern.permute.xlu0 0
        %496 = vperm.xlu0 %495, %v482
        %v497 = vpop.permute.xlu0 %496
        %500 = vset.pattern.permute.xlu0 0
        %501 = vperm.xlu0 %500, %v483
        %v502 = vpop.permute.xlu0 %501
        %505 = vset.pattern.permute.xlu0 0
        %506 = vperm.xlu0 %505, %v484
        %v507 = vpop.permute.xlu0 %506
        %510 = vset.pattern.permute.xlu0 0
        %511 = vperm.xlu0 %510, %v485
        %v512 = vpop.permute.xlu0 %511
        %515 = vset.pattern.permute.xlu0 0
        %516 = vperm.xlu0 %515, %v486
        %v517 = vpop.permute.xlu0 %516
        %520 = vset.pattern.permute.xlu0 0
        %521 = vperm.xlu0 %520, %v487
        %v522 = vpop.permute.xlu0 %521
        %525 = vset.pattern.permute.xlu0 0
        %526 = vperm.xlu0 %525, %v488
        %v527 = vpop.permute.xlu0 %526
        %vm529 = vcmask 523264
        %v531 = vsel %vm529, %v473, 0
        %v534 = vsel %vm529, %v474, 0
        %v537 = vsel %vm529, %v475, 0
        %v540 = vsel %vm529, %v476, 0
        %v543 = vsel %vm529, %v477, 0
        %v546 = vsel %vm529, %v478, 0
        %v549 = vsel %vm529, %v479, 0
        %v552 = vsel %vm529, %v480, 0
        %554 = vmatprep.subr.mxu0 0.0
        %555 = vmatpush1.msra.mxu0 0.0
        %556 = vmatprep.subr.mxu0 0.0
        %557 = vmatpush1.msra.mxu0 0.0
        %558 = vmatprep.subr.mxu0 0.0
        %559 = vmatpush1.msra.mxu0 0.0
        %560 = vmatprep.subr.mxu0 0.0
        %561 = vmatpush1.msra.mxu0 0.0
        %562 = vmatprep.subr.mxu0 0.0
        %563 = vmatpush1.msra.mxu0 0.0
        %564 = vmatprep.subr.mxu0 0.0
        %565 = vmatpush1.msra.mxu0 0.0
        %566 = vmatprep.subr.mxu0 0.0
        %567 = vmatpush1.msra.mxu0 0.0
        %568 = vmatprep.subr.mxu0 0.0
        %569 = vmatpush1.msra.mxu0 0.0
        %570 = vmatprep.subr.mxu0 0.0
        %571 = vmatpush1.msra.mxu0 %v472
        %572 = vmatprep.subr.mxu0 0.0
        %573 = vmatpush1.msra.mxu0 %v471
        %574 = vmatprep.subr.mxu0 0.0
        %575 = vmatpush1.msra.mxu0 %v470
        %576 = vmatprep.subr.mxu0 0.0
        %577 = vmatpush1.msra.mxu0 %v469
        %578 = vmatprep.subr.mxu0 0.0
        %579 = vmatpush1.msra.mxu0 %v468
        %580 = vmatprep.subr.mxu0 0.0
        %581 = vmatpush1.msra.mxu0 %v467
        %582 = vmatprep.subr.mxu0 0.0
        %583 = vmatpush1.msra.mxu0 %v466
        %584 = vmatprep.subr.mxu0 0.0
        %585 = vmatpush1.msra.mxu0 %v465
        %586 = vmatprep.subr.mxu0 0.0
        %587 = vmatpush2.msra.mxu0 0.0
        %588 = vmatprep.subr.mxu0 0.0
        %589 = vmatpush2.msra.mxu0 0.0
        %590 = vmatprep.subr.mxu0 0.0
        %591 = vmatpush2.msra.mxu0 0.0
        %592 = vmatprep.subr.mxu0 0.0
        %593 = vmatpush2.msra.mxu0 0.0
        %594 = vmatprep.subr.mxu0 0.0
        %595 = vmatpush2.msra.mxu0 0.0
        %596 = vmatprep.subr.mxu0 0.0
        %597 = vmatpush2.msra.mxu0 0.0
        %598 = vmatprep.subr.mxu0 0.0
        %599 = vmatpush2.msra.mxu0 0.0
        %600 = vmatprep.subr.mxu0 0.0
        %601 = vmatpush2.msra.mxu0 0.0
        %602 = vmatprep.subr.mxu0 0.0
        %603 = vmatpush2.msra.mxu0 0.0
        %604 = vmatprep.subr.mxu0 0.0
        %605 = vmatpush2.msra.mxu0 0.0
        %606 = vmatprep.subr.mxu0 0.0
        %607 = vmatpush2.msra.mxu0 0.0
        %608 = vmatprep.subr.mxu0 0.0
        %609 = vmatpush2.msra.mxu0 0.0
        %610 = vmatprep.subr.mxu0 0.0
        %611 = vmatpush2.msra.mxu0 0.0
        %612 = vmatprep.subr.mxu0 0.0
        %613 = vmatpush2.msra.mxu0 0.0
        %614 = vmatprep.subr.mxu0 0.0
        %615 = vmatpush2.msra.mxu0 0.0
        %616 = vmatprep.subr.mxu0 0.0
        %617 = vmatpush2.msra.mxu0 0.0
        %618 = vmatprep.mubr.f32.mxu0 0.0
        %619 = vmatmul.mubr.f32.gmra.mxu0 %v531
        %v620 = vpop.f32.mrf.mxu0
        %v621 = vadd.f32 %v492, %v620
        %v622 = vpop.f32.mrf.mxu0
        %623 = vmatprep.mubr.f32.mxu0 0.0
        %624 = vmatmul.mubr.f32.gmra.mxu0 %v534
        %v625 = vpop.f32.mrf.mxu0
        %v626 = vadd.f32 %v497, %v625
        %v627 = vpop.f32.mrf.mxu0
        %628 = vmatprep.mubr.f32.mxu0 0.0
        %629 = vmatmul.mubr.f32.gmra.mxu0 %v537
        %v630 = vpop.f32.mrf.mxu0
        %v631 = vadd.f32 %v502, %v630
        %v632 = vpop.f32.mrf.mxu0
        %633 = vmatprep.mubr.f32.mxu0 0.0
        %634 = vmatmul.mubr.f32.gmra.mxu0 %v540
        %v635 = vpop.f32.mrf.mxu0
        %v636 = vadd.f32 %v507, %v635
        %v637 = vpop.f32.mrf.mxu0
        %638 = vmatprep.mubr.f32.mxu0 0.0
        %639 = vmatmul.mubr.f32.gmra.mxu0 %v543
        %v640 = vpop.f32.mrf.mxu0
        %v641 = vadd.f32 %v512, %v640
        %v642 = vpop.f32.mrf.mxu0
        %643 = vmatprep.mubr.f32.mxu0 0.0
        %644 = vmatmul.mubr.f32.gmra.mxu0 %v546
        %v645 = vpop.f32.mrf.mxu0
        %v646 = vadd.f32 %v517, %v645
        %v647 = vpop.f32.mrf.mxu0
        %648 = vmatprep.mubr.f32.mxu0 0.0
        %649 = vmatmul.mubr.f32.gmra.mxu0 %v549
        %v650 = vpop.f32.mrf.mxu0
        %v651 = vadd.f32 %v522, %v650
        %v652 = vpop.f32.mrf.mxu0
        %653 = vmatprep.mubr.f32.mxu0 0.0
        %654 = vmatmul.mubr.f32.gmra.mxu0 %v552
        %v655 = vpop.f32.mrf.mxu0
        %v656 = vadd.f32 %v527, %v655
        %v657 = vpop.f32.mrf.mxu0
        %658 = vdwg.mxu0
        %v659 = vmax.f32 %v621, 0.0
        %v660 = vmax.f32 %v626, 0.0
        %v661 = vmax.f32 %v631, 0.0
        %v662 = vmax.f32 %v636, 0.0
        %v663 = vmax.f32 %v641, 0.0
        %v664 = vmax.f32 %v646, 0.0
        %v665 = vmax.f32 %v651, 0.0
        %v666 = vmax.f32 %v656, 0.0
        %v667 = vld [vmem:[%s5] sm:$0xff]
        %v668 = vld [vmem:[%s5 + $0x8] sm:$0xff]
        %v669 = vld [vmem:[%s5 + $0x10] sm:$0xff]
        %v670 = vld [vmem:[%s5 + $0x18] sm:$0xff]
        %v671 = vld [vmem:[%s5 + $0x20] sm:$0xff]
        %v672 = vld [vmem:[%s5 + $0x28] sm:$0xff]
        %v673 = vld [vmem:[%s5 + $0x30] sm:$0xff]
        %v674 = vld [vmem:[%s5 + $0x38] sm:$0xff]
        %676 = vset.pattern.permute.xlu0 0
        %677 = vperm.xlu0 %676, %v667
        %v678 = vpop.permute.xlu0 %677
        %681 = vset.pattern.permute.xlu0 0
        %682 = vperm.xlu0 %681, %v668
        %v683 = vpop.permute.xlu0 %682
        %686 = vset.pattern.permute.xlu0 0
        %687 = vperm.xlu0 %686, %v669
        %v688 = vpop.permute.xlu0 %687
        %691 = vset.pattern.permute.xlu0 0
        %692 = vperm.xlu0 %691, %v670
        %v693 = vpop.permute.xlu0 %692
        %696 = vset.pattern.permute.xlu0 0
        %697 = vperm.xlu0 %696, %v671
        %v698 = vpop.permute.xlu0 %697
        %701 = vset.pattern.permute.xlu0 0
        %702 = vperm.xlu0 %701, %v672
        %v703 = vpop.permute.xlu0 %702
        %706 = vset.pattern.permute.xlu0 0
        %707 = vperm.xlu0 %706, %v673
        %v708 = vpop.permute.xlu0 %707
        %711 = vset.pattern.permute.xlu0 0
        %712 = vperm.xlu0 %711, %v674
        %v713 = vpop.permute.xlu0 %712
        %v715 = vmul.f32 %v659, %v678
        %v716 = vmul.f32 %v660, %v683
        %v717 = vmul.f32 %v661, %v688
        %v718 = vmul.f32 %v662, %v693
        %v719 = vmul.f32 %v663, %v698
        %v720 = vmul.f32 %v664, %v703
        %v721 = vmul.f32 %v665, %v708
        %v722 = vmul.f32 %v666, %v713
        %v723 = vadd.f32 %v715, %v716
        %v724 = vadd.f32 %v723, %v717
        %v725 = vadd.f32 %v724, %v718
        %v726 = vadd.f32 %v725, %v719
        %v727 = vadd.f32 %v726, %v720
        %v728 = vadd.f32 %v727, %v721
        %v729 = vadd.f32 %v728, %v722
        %v730 = vrot.slane %v729, 4
        %v731 = vadd.f32 %v729, %v730
        %v732 = vrot.slane %v731, 2
        %v733 = vadd.f32 %v731, %v732
        %v734 = vrot.slane %v733, 1
        %v735 = vadd.f32 %v733, %v734
        %s736 = sld [smem:[#allocation2]]
        %v737 = vstv %s736
        %v738 = vadd.f32 %v735, %v737
        %739 = vst [vmem:[%s269] sm:$0x1] %v738
        %s740 = sand.u32 %s182, 1
        %s741 = scalar_lea.sflag [#allocation4], %s740
        %s742 = sand.u32 %s182, 1
        %s743 = scalar_lea.vmem [#allocation3], %s742
        // Predicated region
        $region49: #{tpu_custom_call.1} parent=47 // pred_check
          %p744 = pneg %p192
        $region50: #{tpu_custom_call.1} parent=47 // pred_check_branch
          %746 = sbr.rel (%p744) target = $region52
        $region51: #{tpu_custom_call.1} parent=47 // pred_region
          %s748 = ssub.s32 16, 16
          %749 = vsyncadd %s741, %s748
          %s750 = smul.addr %s22, 16
          %s751 = scalar_lea.hbm %s7, %s750
          %s753 = sshll.u32 %s743, 4
          %s754 = int_to_ptr.vmem [resolvable:$true] %s753
          %756 = dma.vmem_to_hbm [thread:$0]  %s754, 16, %s751, %s741
        $region52: #{tpu_custom_call.1} parent=47 // pred_fallthru
          _
      $region48: #{tpu_custom_call.1} parent=5 // pred_fallthru
        _
      %p757 = scmp.le.s32.totalorder 2, %s17
      // Predicated region
      $region53: #{tpu_custom_call.1} parent=5 // pred_check
        %p758 = pneg %p757
      $region54: #{tpu_custom_call.1} parent=5 // pred_check_branch
        %760 = sbr.rel (%p758) target = $region56
      $region55: #{tpu_custom_call.1} parent=5 // pred_region
        %s761 = ssub.s32 %s17, 2
        // Predicated region
        $region57: #{tpu_custom_call.1} parent=55 // pred_check
          %p762 = pneg %p198
        $region58: #{tpu_custom_call.1} parent=55 // pred_check_branch
          %764 = sbr.rel (%p762) target = $region60
        $region59: #{tpu_custom_call.1} parent=55 // pred_region
          %s765 = sand.u32 %s183, 1
          %s766 = scalar_lea.sflag [#allocation4], %s765
          %s767 = sand.u32 %s183, 1
          %s768 = scalar_lea.vmem [#allocation3], %s767
          %769 = dma.done %s766, 16
        $region60: #{tpu_custom_call.1} parent=55 // pred_fallthru
          _
      $region56: #{tpu_custom_call.1} parent=5 // pred_fallthru
        _
    $region6: #{tpu_custom_call.1} parent=1 // loop_footer
      %s21 = sadd.s32 1, %s17
    $region7: #{tpu_custom_call.1} parent=1 // loop_footer_branch
      %16 = sbr.rel target = $region3
    $region8: #{tpu_custom_call.1} parent=1 // loop_exit
      _
    %770 = vsyncpa [#allocation4], 1
    %s771 = scalar_lea.sflag [#allocation4], 1
    %772 = vsyncpa %s771, 1

</llo_original>
